<compile_context>
chip_gen: v7x
topology: tpu7x:2x2x1
jax: 0.10.0
libtpu: 0.0.40
codegen_flags: <defaults>
</compile_context>

<pallas_src>
import functools

import jax
import jax.numpy as jnp
from jax.experimental import pallas as pl
from jax.experimental.pallas import tpu as pltpu

IN_DIM = 390          # fixed by the module (Linear(390, ...))
LN_EPS = 1e-5         # PyTorch nn.LayerNorm default
_MIB = 1024 * 1024


def _round_up(v, m):
    return ((v + m - 1) // m) * m


def _phys_vmem_bytes():
    """Physical VMEM per TensorCore; assume the smallest (v7x, 64 MiB) if unknown."""
    try:
        info = pltpu.get_tpu_info()
        return int(getattr(info, "vmem_capacity_bytes", 64 * _MIB))
    except Exception:
        return 64 * _MIB


def _layernorm_relu(h, gamma, beta, n_real, eps=LN_EPS):
    """Fused single-pass LayerNorm + ReLU over a (possibly zero-padded) last dim.

    Statistics use divisor 1/n_real; padded columns are exactly zero on input and
    gamma/beta are zero there, so padded outputs stay exactly zero.
    """
    inv_n = 1.0 / n_real
    s1 = jnp.sum(h, axis=-1, keepdims=True)
    s2 = jnp.sum(h * h, axis=-1, keepdims=True)
    mean = s1 * inv_n
    var = jnp.maximum(s2 * inv_n - mean * mean, 0.0)
    inv = jax.lax.rsqrt(var + eps)
    y = (h - mean) * inv * gamma + beta
    return jnp.maximum(y, 0.0)


def xembed_kernel(H_real, E_real,
                  x_ref,
                  w1_ref, b1_ref, g1_ref, be1_ref,
                  w2_ref, b2_ref, g2_ref, be2_ref,
                  o_ref):
    # Row tile of the input: (tm, F_pad); weights fully resident in VMEM.
    x = x_ref[...]

    # --- Linear(390 -> 2E) + LayerNorm + ReLU ---
    # Operands share a dtype (matched in the wrapper); accumulate in f32.
    h = jnp.dot(x, w1_ref[...], preferred_element_type=jnp.float32)
    h = h + b1_ref[...]
    h = _layernorm_relu(h, g1_ref[...], be1_ref[...], H_real)

    # --- Linear(2E -> E) + LayerNorm + ReLU ---
    # Cast the activation down to the weight dtype (no-op for f32) rather than
    # casting the resident weight up every grid step.
    o = jnp.dot(h.astype(w2_ref.dtype), w2_ref[...],
                preferred_element_type=jnp.float32)
    o = o + b2_ref[...]
    o = _layernorm_relu(o, g2_ref[...], be2_ref[...], E_real)

    o_ref[...] = o.astype(o_ref.dtype)


@functools.partial(jax.jit, static_argnames=("tm", "mxu_dtype", "pad_k"))
def xembed_forward(x, x_mask, params, *, tm=1024, mxu_dtype=None, pad_k=False):
    B, L, F = x.shape
    assert F == IN_DIM
    N = B * L

    w1, b1, g1, be1, w2, b2, g2, be2 = params
    H = w1.shape[1]   # 2 * embed_dim (real)
    E = w2.shape[1]   # embed_dim     (real)

    out_dtype = x.dtype

    # --- dtype matching for the MXU (single native pass, no silent promotion) ---
    mm_dtype = jnp.dtype(mxu_dtype) if mxu_dtype is not None else jnp.dtype(w1.dtype)
    x2 = x.reshape(N, F).astype(mm_dtype)
    w1c = w1.astype(mm_dtype)
    w2c = w2.astype(mm_dtype)
    # Bias / LN params pre-cast to f32 once (resident; no per-step kernel casts).
    b1c, g1c, be1c = (p.astype(jnp.float32) for p in (b1, g1, be1))
    b2c, g2c, be2c = (p.astype(jnp.float32) for p in (b2, g2, be2))

    # --- lane-dense padding of feature dims (multiples of 128) ---
    H_pad = _round_up(H, 128)
    E_pad = _round_up(E, 128)
    F_pad = _round_up(F, 128) if pad_k else F   # 512 when pad_k (aligned input DMA)

    if F_pad != F:
        x2 = jnp.pad(x2, ((0, 0), (0, F_pad - F)))
        w1c = jnp.pad(w1c, ((0, F_pad - F), (0, 0)))
    if H_pad != H:
        w1c = jnp.pad(w1c, ((0, 0), (0, H_pad - H)))
        b1c = jnp.pad(b1c, ((0, 0), (0, H_pad - H)))
        g1c = jnp.pad(g1c, ((0, 0), (0, H_pad - H)))
        be1c = jnp.pad(be1c, ((0, 0), (0, H_pad - H)))
        w2c = jnp.pad(w2c, ((0, H_pad - H), (0, 0)))
    if E_pad != E:
        w2c = jnp.pad(w2c, ((0, 0), (0, E_pad - E)))
        b2c = jnp.pad(b2c, ((0, 0), (0, E_pad - E)))
        g2c = jnp.pad(g2c, ((0, 0), (0, E_pad - E)))
        be2c = jnp.pad(be2c, ((0, 0), (0, E_pad - E)))

    # --- row tiling: large tiles, sublane-aligned, >= 2 grid steps when possible ---
    row_align = 16 if (mm_dtype == jnp.bfloat16 or jnp.dtype(out_dtype) == jnp.bfloat16) else 8
    tm_eff = max(row_align, _round_up(min(int(tm), N), row_align))
    # Ensure the "parallel" grid axis has at least 2 steps so both v7x TCs get work.
    while tm_eff > row_align and pl.cdiv(N, tm_eff) < 2:
        tm_eff = max(row_align, _round_up(tm_eff // 2, row_align))

    n_pad = _round_up(N, tm_eff)
    if n_pad != N:
        x2 = jnp.pad(x2, ((0, n_pad - N), (0, 0)))

    def full2d(shape):
        return pl.BlockSpec(shape, lambda i: (0, 0))

    # --- VMEM budget: actual need + headroom, clamped below physical capacity ---
    bpe_x = int(jnp.dtype(mm_dtype).itemsize)
    bpe_o = int(jnp.dtype(out_dtype).itemsize)
    need = (
        2 * tm_eff * F_pad * bpe_x                       # x tile, double-buffered
        + 2 * tm_eff * E_pad * bpe_o                     # out tile, double-buffered
        + 2 * (F_pad * H_pad + H_pad * E_pad) * bpe_x    # resident weights (x2 buffers)
        + 2 * 3 * (H_pad + E_pad) * 4 * 2                # bias / gamma / beta (f32)
        + tm_eff * (H_pad + E_pad) * 4                   # f32 activation temps
        + 6 * _MIB                                       # Mosaic internal scratch headroom
    )
    vmem_limit = min(max(int(need), 32 * _MIB), _phys_vmem_bytes() - 8 * _MIB)

    cost = pl.CostEstimate(
        flops=2 * n_pad * (F_pad * H_pad + H_pad * E_pad),
        transcendentals=2 * n_pad,                       # two rsqrt per row
        bytes_accessed=n_pad * (F_pad * bpe_x + E_pad * bpe_o)
        + (F_pad * H_pad + H_pad * E_pad) * bpe_x
        + 3 * (H_pad + E_pad) * 4,
    )

    out = pl.pallas_call(
        functools.partial(xembed_kernel, H, E),
        out_shape=jax.ShapeDtypeStruct((n_pad, E_pad), out_dtype),
        grid_spec=pltpu.PrefetchScalarGridSpec(
            num_scalar_prefetch=0,
            grid=(n_pad // tm_eff,),
            in_specs=[
                pl.BlockSpec((tm_eff, F_pad), lambda i: (i, 0)),   # x rows
                full2d((F_pad, H_pad)),                            # w1
                full2d((1, H_pad)),                                # b1
                full2d((1, H_pad)),                                # ln1 gamma
                full2d((1, H_pad)),                                # ln1 beta
                full2d((H_pad, E_pad)),                            # w2
                full2d((1, E_pad)),                                # b2
                full2d((1, E_pad)),                                # ln2 gamma
                full2d((1, E_pad)),                                # ln2 beta
            ],
            out_specs=pl.BlockSpec((tm_eff, E_pad), lambda i: (i, 0)),
        ),
        compiler_params=pltpu.CompilerParams(
            dimension_semantics=("parallel",),
            vmem_limit_bytes=int(vmem_limit),
        ),
        cost_estimate=cost,
    )(x2, w1c, b1c, g1c, be1c, w2c, b2c, g2c, be2c)

    out = out[:N, :E].reshape(B, L, E)
    return out, x_mask


def init_params(key, embed_dim, dtype=jnp.float32):
    """Deterministic synthetic init (shapes match the PyTorch module)."""
    H = embed_dim * 2
    k1, k2, k3, k4, k5, k6 = jax.random.split(key, 6)
    # Linear weights stored as (in, out) so the kernel does x @ W
    # (PyTorch nn.Linear stores (out, in) -> transpose on real imports).
    w1 = (jax.random.normal(k1, (IN_DIM, H), dtype) / jnp.sqrt(IN_DIM)).astype(dtype)
    b1 = jax.random.normal(k2, (1, H), dtype) * 0.01
    g1 = 1.0 + 0.1 * jax.random.normal(k3, (1, H), dtype)
    be1 = 0.1 * jax.random.normal(k4, (1, H), dtype)
    w2 = (jax.random.normal(k5, (H, embed_dim), dtype) / jnp.sqrt(H)).astype(dtype)
    b2 = jax.random.normal(k6, (1, embed_dim), dtype) * 0.01
    g2 = jnp.ones((1, embed_dim), dtype)
    be2 = jnp.zeros((1, embed_dim), dtype)
    return (w1, b1, g1, be1, w2, b2, g2, be2)


def _layernorm_ref(h, gamma, beta, eps=LN_EPS):
    mean = jnp.mean(h, axis=-1, keepdims=True)
    var = jnp.mean(jnp.square(h - mean), axis=-1, keepdims=True)
    return (h - mean) * jax.lax.rsqrt(var + eps) * gamma + beta


def xembed_reference(x, x_mask, params):
    """Plain-JAX reference for sanity checking."""
    w1, b1, g1, be1, w2, b2, g2, be2 = params
    h = x @ w1 + b1
    h = jnp.maximum(_layernorm_ref(h, g1, be1), 0.0)
    o = h @ w2 + b2
    o = jnp.maximum(_layernorm_ref(o, g2, be2), 0.0)
    return o, x_mask


if __name__ == "__main__":
    key = jax.random.PRNGKey(0)
    kx, km, kp, kx2, km2 = jax.random.split(key, 5)

    # Small shapes; feature dim fixed at 390 by the module.
    B, L, E = 2, 8, 32
    x = jax.random.normal(kx, (B, L, IN_DIM), jnp.float32)
    x_mask = (jax.random.uniform(km, (B, L)) > 0.5)
    params = init_params(kp, E)

    # Case 1: f32 path (matched f32 MXU operands), exact vs. the JAX reference.
    out, out_mask = xembed_forward(x, x_mask, params)
    out = jax.block_until_ready(out)
    out_mask = jax.block_until_ready(out_mask)

    ref_out, ref_mask = xembed_reference(x, x_mask, params)
    assert out.shape == (B, L, E)
    assert jnp.allclose(out, ref_out, atol=1e-4, rtol=1e-4)
    assert jnp.array_equal(out_mask, ref_mask)

    # Case 2: ragged-N padding path (N = 15, not a tile multiple).
    B2, L2 = 3, 5
    x_b = jax.random.normal(kx2, (B2, L2, IN_DIM), jnp.float32)
    x_mask_b = (jax.random.uniform(km2, (B2, L2)) > 0.5)
    out_b, out_mask_b = xembed_forward(x_b, x_mask_b, params)
    out_b = jax.block_until_ready(out_b)
    ref_out_b, _ = xembed_reference(x_b, x_mask_b, params)
    assert out_b.shape == (B2, L2, E)
    assert jnp.allclose(out_b, ref_out_b, atol=1e-4, rtol=1e-4)
    assert jnp.array_equal(out_mask_b, x_mask_b)

    # Case 3: bf16 MXU path (f32 params cast once in the wrapper), looser tolerance.
    out_c, _ = xembed_forward(x, x_mask, params, mxu_dtype=jnp.bfloat16)
    out_c = jax.block_until_ready(out_c)
    assert out_c.shape == (B, L, E)
    assert bool(jnp.all(jnp.isfinite(out_c)))
    assert jnp.allclose(out_c, ref_out, atol=1e-1, rtol=1e-1)

    # Case 4: aligned-K path (pad_k pads 390 -> 512 with zeros); exact result.
    out_d, _ = xembed_forward(x, x_mask, params, pad_k=True)
    out_d = jax.block_until_ready(out_d)
    assert jnp.allclose(out_d, ref_out, atol=1e-4, rtol=1e-4)

    print("KERNEL_OK")
</pallas_src>

<mosaic_0001>
module attributes {stable_mosaic.version = 11 : i64} {
  func.func @xembed_kernel(%arg0: i32, %arg1: memref<8x390xf32, #tpu.memory_space<vmem>>, %arg2: memref<390x128xf32, #tpu.memory_space<vmem>>, %arg3: memref<1x128xf32, #tpu.memory_space<vmem>>, %arg4: memref<1x128xf32, #tpu.memory_space<vmem>>, %arg5: memref<1x128xf32, #tpu.memory_space<vmem>>, %arg6: memref<128x128xf32, #tpu.memory_space<vmem>>, %arg7: memref<1x128xf32, #tpu.memory_space<vmem>>, %arg8: memref<1x128xf32, #tpu.memory_space<vmem>>, %arg9: memref<1x128xf32, #tpu.memory_space<vmem>>, %arg10: memref<8x128xf32, #tpu.memory_space<vmem>>) attributes {dimension_semantics = [#tpu.dimension_semantics<parallel>], iteration_bounds = array<i64: 2>, scalar_prefetch = 0 : i64, scratch_operands = 0 : i64, tpu.core_type = #tpu.core_type<tc>, window_params = [{transform_indices = @transform_0, window_bounds = array<i64: 8, 390>}, {pipeline_mode = #tpu.pipeline_mode<synchronous>, transform_indices = @transform_1, window_bounds = array<i64: 390, 128>}, {pipeline_mode = #tpu.pipeline_mode<synchronous>, transform_indices = @transform_2, window_bounds = array<i64: 1, 128>}, {pipeline_mode = #tpu.pipeline_mode<synchronous>, transform_indices = @transform_3, window_bounds = array<i64: 1, 128>}, {pipeline_mode = #tpu.pipeline_mode<synchronous>, transform_indices = @transform_4, window_bounds = array<i64: 1, 128>}, {pipeline_mode = #tpu.pipeline_mode<synchronous>, transform_indices = @transform_5, window_bounds = array<i64: 128, 128>}, {pipeline_mode = #tpu.pipeline_mode<synchronous>, transform_indices = @transform_6, window_bounds = array<i64: 1, 128>}, {pipeline_mode = #tpu.pipeline_mode<synchronous>, transform_indices = @transform_7, window_bounds = array<i64: 1, 128>}, {pipeline_mode = #tpu.pipeline_mode<synchronous>, transform_indices = @transform_8, window_bounds = array<i64: 1, 128>}, {transform_indices = @transform_9, window_bounds = array<i64: 8, 128>}]} {
    %c0 = arith.constant 0 : index
    %c0_0 = arith.constant 0 : index
    %0 = vector.load %arg1[%c0, %c0_0] : memref<8x390xf32, #tpu.memory_space<vmem>>, vector<8x390xf32>
    %c0_1 = arith.constant 0 : index
    %c0_2 = arith.constant 0 : index
    %1 = vector.load %arg2[%c0_1, %c0_2] : memref<390x128xf32, #tpu.memory_space<vmem>>, vector<390x128xf32>
    %cst = arith.constant dense<0.000000e+00> : vector<8x128xf32>
    %2 = tpu.matmul %0, %1, %cst {dimension_numbers = #tpu.dot_dimension_numbers<[1], [0], [0], [1], [0, 0, 1, 1], [], []>} : vector<8x390xf32>, vector<390x128xf32>, vector<8x128xf32> -> vector<8x128xf32>
    %c0_3 = arith.constant 0 : index
    %c0_4 = arith.constant 0 : index
    %3 = vector.load %arg3[%c0_3, %c0_4] : memref<1x128xf32, #tpu.memory_space<vmem>>, vector<1x128xf32>
    %4 = vector.broadcast %3 : vector<1x128xf32> to vector<8x128xf32>
    %5 = arith.addf %2, %4 : vector<8x128xf32>
    %c0_5 = arith.constant 0 : index
    %c0_6 = arith.constant 0 : index
    %6 = vector.load %arg4[%c0_5, %c0_6] : memref<1x128xf32, #tpu.memory_space<vmem>>, vector<1x128xf32>
    %c0_7 = arith.constant 0 : index
    %c0_8 = arith.constant 0 : index
    %7 = vector.load %arg5[%c0_7, %c0_8] : memref<1x128xf32, #tpu.memory_space<vmem>>, vector<1x128xf32>
    %cst_9 = arith.constant dense<0.000000e+00> : vector<8xf32>
    %8 = vector.multi_reduction <add>, %5, %cst_9 [1] : vector<8x128xf32> to vector<8xf32>
    %9 = vector.shape_cast %8 : vector<8xf32> to vector<8x1xf32>
    %10 = arith.mulf %5, %5 : vector<8x128xf32>
    %cst_10 = arith.constant dense<0.000000e+00> : vector<8xf32>
    %11 = vector.multi_reduction <add>, %10, %cst_10 [1] : vector<8x128xf32> to vector<8xf32>
    %12 = vector.shape_cast %11 : vector<8xf32> to vector<8x1xf32>
    %cst_11 = arith.constant 1.562500e-02 : f32
    %13 = vector.broadcast %cst_11 : f32 to vector<8x1xf32>
    %14 = arith.mulf %9, %13 : vector<8x1xf32>
    %cst_12 = arith.constant 1.562500e-02 : f32
    %15 = vector.broadcast %cst_12 : f32 to vector<8x1xf32>
    %16 = arith.mulf %12, %15 : vector<8x1xf32>
    %17 = arith.mulf %14, %14 : vector<8x1xf32>
    %18 = arith.subf %16, %17 : vector<8x1xf32>
    %cst_13 = arith.constant 0.000000e+00 : f32
    %19 = vector.broadcast %cst_13 : f32 to vector<8x1xf32>
    %20 = arith.maximumf %18, %19 : vector<8x1xf32>
    %cst_14 = arith.constant 9.99999974E-6 : f32
    %21 = vector.broadcast %cst_14 : f32 to vector<8x1xf32>
    %22 = arith.addf %20, %21 : vector<8x1xf32>
    %23 = math.rsqrt %22 : vector<8x1xf32>
    %24 = vector.broadcast %14 : vector<8x1xf32> to vector<8x128xf32>
    %25 = arith.subf %5, %24 : vector<8x128xf32>
    %26 = vector.broadcast %23 : vector<8x1xf32> to vector<8x128xf32>
    %27 = arith.mulf %25, %26 : vector<8x128xf32>
    %28 = vector.broadcast %6 : vector<1x128xf32> to vector<8x128xf32>
    %29 = arith.mulf %27, %28 : vector<8x128xf32>
    %30 = vector.broadcast %7 : vector<1x128xf32> to vector<8x128xf32>
    %31 = arith.addf %29, %30 : vector<8x128xf32>
    %cst_15 = arith.constant 0.000000e+00 : f32
    %32 = vector.broadcast %cst_15 : f32 to vector<8x128xf32>
    %33 = arith.maximumf %31, %32 : vector<8x128xf32>
    %c0_16 = arith.constant 0 : index
    %c0_17 = arith.constant 0 : index
    %34 = vector.load %arg6[%c0_16, %c0_17] : memref<128x128xf32, #tpu.memory_space<vmem>>, vector<128x128xf32>
    %cst_18 = arith.constant dense<0.000000e+00> : vector<8x128xf32>
    %35 = tpu.matmul %33, %34, %cst_18 {dimension_numbers = #tpu.dot_dimension_numbers<[1], [0], [0], [1], [0, 0, 1, 1], [], []>} : vector<8x128xf32>, vector<128x128xf32>, vector<8x128xf32> -> vector<8x128xf32>
    %c0_19 = arith.constant 0 : index
    %c0_20 = arith.constant 0 : index
    %36 = vector.load %arg7[%c0_19, %c0_20] : memref<1x128xf32, #tpu.memory_space<vmem>>, vector<1x128xf32>
    %37 = vector.broadcast %36 : vector<1x128xf32> to vector<8x128xf32>
    %38 = arith.addf %35, %37 : vector<8x128xf32>
    %c0_21 = arith.constant 0 : index
    %c0_22 = arith.constant 0 : index
    %39 = vector.load %arg8[%c0_21, %c0_22] : memref<1x128xf32, #tpu.memory_space<vmem>>, vector<1x128xf32>
    %c0_23 = arith.constant 0 : index
    %c0_24 = arith.constant 0 : index
    %40 = vector.load %arg9[%c0_23, %c0_24] : memref<1x128xf32, #tpu.memory_space<vmem>>, vector<1x128xf32>
    %cst_25 = arith.constant dense<0.000000e+00> : vector<8xf32>
    %41 = vector.multi_reduction <add>, %38, %cst_25 [1] : vector<8x128xf32> to vector<8xf32>
    %42 = vector.shape_cast %41 : vector<8xf32> to vector<8x1xf32>
    %43 = arith.mulf %38, %38 : vector<8x128xf32>
    %cst_26 = arith.constant dense<0.000000e+00> : vector<8xf32>
    %44 = vector.multi_reduction <add>, %43, %cst_26 [1] : vector<8x128xf32> to vector<8xf32>
    %45 = vector.shape_cast %44 : vector<8xf32> to vector<8x1xf32>
    %cst_27 = arith.constant 3.125000e-02 : f32
    %46 = vector.broadcast %cst_27 : f32 to vector<8x1xf32>
    %47 = arith.mulf %42, %46 : vector<8x1xf32>
    %cst_28 = arith.constant 3.125000e-02 : f32
    %48 = vector.broadcast %cst_28 : f32 to vector<8x1xf32>
    %49 = arith.mulf %45, %48 : vector<8x1xf32>
    %50 = arith.mulf %47, %47 : vector<8x1xf32>
    %51 = arith.subf %49, %50 : vector<8x1xf32>
    %cst_29 = arith.constant 0.000000e+00 : f32
    %52 = vector.broadcast %cst_29 : f32 to vector<8x1xf32>
    %53 = arith.maximumf %51, %52 : vector<8x1xf32>
    %cst_30 = arith.constant 9.99999974E-6 : f32
    %54 = vector.broadcast %cst_30 : f32 to vector<8x1xf32>
    %55 = arith.addf %53, %54 : vector<8x1xf32>
    %56 = math.rsqrt %55 : vector<8x1xf32>
    %57 = vector.broadcast %47 : vector<8x1xf32> to vector<8x128xf32>
    %58 = arith.subf %38, %57 : vector<8x128xf32>
    %59 = vector.broadcast %56 : vector<8x1xf32> to vector<8x128xf32>
    %60 = arith.mulf %58, %59 : vector<8x128xf32>
    %61 = vector.broadcast %39 : vector<1x128xf32> to vector<8x128xf32>
    %62 = arith.mulf %60, %61 : vector<8x128xf32>
    %63 = vector.broadcast %40 : vector<1x128xf32> to vector<8x128xf32>
    %64 = arith.addf %62, %63 : vector<8x128xf32>
    %cst_31 = arith.constant 0.000000e+00 : f32
    %65 = vector.broadcast %cst_31 : f32 to vector<8x128xf32>
    %66 = arith.maximumf %64, %65 : vector<8x128xf32>
    %c0_32 = arith.constant 0 : index
    %c0_33 = arith.constant 0 : index
    %67 = vector.load %arg10[%c0_32, %c0_33] : memref<8x128xf32, #tpu.memory_space<vmem>>, vector<8x128xf32>
    tpu.vector_store %arg10[%c0_32, %c0_33], %66 {strides = array<i32>} : memref<8x128xf32, #tpu.memory_space<vmem>>, vector<8x128xf32>,
    return
  }
  func.func @transform_0(%arg0: i32) -> (i32, i32) {
    %c0_i32 = arith.constant 0 : i32
    %c0_i32_0 = arith.constant 0 : i32
    return %arg0, %c0_i32 : i32, i32
  }
  func.func @transform_1(%arg0: i32) -> (i32, i32) {
    %c0_i32 = arith.constant 0 : i32
    %c0_i32_0 = arith.constant 0 : i32
    %c0_i32_1 = arith.constant 0 : i32
    return %c0_i32, %c0_i32_0 : i32, i32
  }
  func.func @transform_2(%arg0: i32) -> (i32, i32) {
    %c0_i32 = arith.constant 0 : i32
    %c0_i32_0 = arith.constant 0 : i32
    %c0_i32_1 = arith.constant 0 : i32
    return %c0_i32, %c0_i32_0 : i32, i32
  }
  func.func @transform_3(%arg0: i32) -> (i32, i32) {
    %c0_i32 = arith.constant 0 : i32
    %c0_i32_0 = arith.constant 0 : i32
    %c0_i32_1 = arith.constant 0 : i32
    return %c0_i32, %c0_i32_0 : i32, i32
  }
  func.func @transform_4(%arg0: i32) -> (i32, i32) {
    %c0_i32 = arith.constant 0 : i32
    %c0_i32_0 = arith.constant 0 : i32
    %c0_i32_1 = arith.constant 0 : i32
    return %c0_i32, %c0_i32_0 : i32, i32
  }
  func.func @transform_5(%arg0: i32) -> (i32, i32) {
    %c0_i32 = arith.constant 0 : i32
    %c0_i32_0 = arith.constant 0 : i32
    %c0_i32_1 = arith.constant 0 : i32
    return %c0_i32, %c0_i32_0 : i32, i32
  }
  func.func @transform_6(%arg0: i32) -> (i32, i32) {
    %c0_i32 = arith.constant 0 : i32
    %c0_i32_0 = arith.constant 0 : i32
    %c0_i32_1 = arith.constant 0 : i32
    return %c0_i32, %c0_i32_0 : i32, i32
  }
  func.func @transform_7(%arg0: i32) -> (i32, i32) {
    %c0_i32 = arith.constant 0 : i32
    %c0_i32_0 = arith.constant 0 : i32
    %c0_i32_1 = arith.constant 0 : i32
    return %c0_i32, %c0_i32_0 : i32, i32
  }
  func.func @transform_8(%arg0: i32) -> (i32, i32) {
    %c0_i32 = arith.constant 0 : i32
    %c0_i32_0 = arith.constant 0 : i32
    %c0_i32_1 = arith.constant 0 : i32
    return %c0_i32, %c0_i32_0 : i32, i32
  }
  func.func @transform_9(%arg0: i32) -> (i32, i32) {
    %c0_i32 = arith.constant 0 : i32
    %c0_i32_0 = arith.constant 0 : i32
    return %arg0, %c0_i32 : i32, i32
  }
}

</mosaic_0001>

<llo_original>
// kernel: xembed_forward.1
$region0: #{xembed_forward.1}
  #allocation0 [shape = 'u32[]', space=smem, size = 0x4, offset = 0x4, fixed_abs, tag = 'smem constant byte address 0x4 - core index']
  #allocation1 [shape = 'u32[144,128]{1,0:T(1,128)}', space=vmem, size = 0x12000, scoped, tag = 'internal scratch']
  %s0 = inlined_call_operand.vmem [shape: f32[16,390], index: 0, kind: input, shape index: {}]
  %s1 = inlined_call_operand.vmem [shape: f32[390,128], index: 1, kind: input, shape index: {}]
  %s2 = inlined_call_operand.vmem [shape: f32[1,128], index: 2, kind: input, shape index: {}]
  %s3 = inlined_call_operand.vmem [shape: f32[1,128], index: 3, kind: input, shape index: {}]
  %s4 = inlined_call_operand.vmem [shape: f32[1,128], index: 4, kind: input, shape index: {}]
  %s5 = inlined_call_operand.vmem [shape: f32[128,128], index: 5, kind: input, shape index: {}]
  %s6 = inlined_call_operand.vmem [shape: f32[1,128], index: 6, kind: input, shape index: {}]
  %s7 = inlined_call_operand.vmem [shape: f32[1,128], index: 7, kind: input, shape index: {}]
  %s8 = inlined_call_operand.vmem [shape: f32[1,128], index: 8, kind: input, shape index: {}]
  %s9 = inlined_call_operand.vmem [shape: f32[16,128], index: 9, kind: output, shape index: {}]
  %s10 = sld [smem:[#allocation0]]
  $region69: #{xembed_forward.1} parent=0
    _
  %s12 = ssub.s32 1, %s10
  %s13 = scalar_select 0, %s12, %s10
  loop: start=0, step=1, limit=4
  $region2: #{xembed_forward.1} parent=0 // loop_pre_header
    _
  $region3: #{xembed_forward.1} parent=0 // loop_header
    %s15 = sphi 0, %s19
    %p16 = scmp.ge.s32.totalorder %s15, 4
    %s25 = sphi 0, %s27
    %s28 = sphi 0, %s25
    %s29 = sphi 0, %s28
    %s45 = sphi 0, %s29
    %s49 = sphi 0, %s49
    %s51 = sphi 0, %s49
    %s52 = sphi 0, %s51
    %s66 = sphi 0, %s52
    %s70 = sphi 0, %s70
    %s72 = sphi 0, %s70
    %s73 = sphi 0, %s72
    %s87 = sphi 0, %s73
    %s91 = sphi 0, %s91
    %s93 = sphi 0, %s91
    %s94 = sphi 0, %s93
    %s108 = sphi 0, %s94
    %s112 = sphi 0, %s112
    %s114 = sphi 0, %s112
    %s115 = sphi 0, %s114
    %s129 = sphi 0, %s115
    %s133 = sphi 0, %s133
    %s135 = sphi 0, %s133
    %s136 = sphi 0, %s135
    %s150 = sphi 0, %s136
    %s154 = sphi 0, %s154
    %s156 = sphi 0, %s154
    %s157 = sphi 0, %s156
    %s171 = sphi 0, %s157
    %s175 = sphi 0, %s175
    %s177 = sphi 0, %s175
    %s178 = sphi 0, %s177
    %s192 = sphi 0, %s178
    %s196 = sphi 0, %s196
    %s198 = sphi 0, %s196
    %s199 = sphi 0, %s198
    %s213 = sphi 0, %s199
    %s219 = sphi 0, %s221
    %s222 = sphi 0, %s219
    %s223 = sphi 0, %s222
    %s239 = sphi 0, %s223
  $region4: #{xembed_forward.1} parent=0 // loop_header_branch
    %18 = sbr.rel (%p16) target = $region8
  $region5: #{xembed_forward.1} parent=0 // loop_body
    %s20 = ssub.s32 %s15, 1
    %s21 = ssub.s32 %s15, 2
    %s22 = sadd.s32 %s15, 1
    %s23 = ssub.s32 %s15, %s22
    %p24 = scmp.eq.s32.totalorder %s23, 0
    %s26 = sadd.s32 %s25, 1
    %s27 = scalar_select %p24, %s25, %s26
    %p30 = pneg %p24
    %p31 = scmp.eq.s32.totalorder %s15, 1
    %p32 = por %p30, %p31
    %p33 = scmp.ne.s32.totalorder %s25, %s28
    %p34 = scmp.eq.s32.totalorder %s15, 0
    %p35 = por %p33, %p34
    %p36 = scmp.ne.s32.totalorder %s25, %s28
    %p37 = scmp.eq.s32.totalorder %s20, 1
    %p38 = por %p36, %p37
    %p39 = scmp.ne.s32.totalorder %s28, %s29
    %p40 = scmp.eq.s32.totalorder %s20, 0
    %p41 = por %p39, %p40
    %p42 = scmp.ne.s32.totalorder %s28, %s29
    %p43 = scmp.eq.s32.totalorder %s21, 1
    %p44 = por %p42, %p43
    %p46 = scmp.ne.s32.totalorder %s29, %s45
    %p47 = scmp.eq.s32.totalorder %s21, 0
    %p48 = por %p46, %p47
    %s50 = sadd.s32 %s49, 1
    %p53 = scmp.eq.s32.totalorder %s15, 1
    %p54 = scmp.ne.s32.totalorder %s49, %s51
    %p55 = scmp.eq.s32.totalorder %s15, 0
    %p56 = por %p54, %p55
    %p57 = scmp.ne.s32.totalorder %s49, %s51
    %p58 = scmp.eq.s32.totalorder %s20, 1
    %p59 = por %p57, %p58
    %p60 = scmp.ne.s32.totalorder %s51, %s52
    %p61 = scmp.eq.s32.totalorder %s20, 0
    %p62 = por %p60, %p61
    %p63 = scmp.ne.s32.totalorder %s51, %s52
    %p64 = scmp.eq.s32.totalorder %s21, 1
    %p65 = por %p63, %p64
    %p67 = scmp.ne.s32.totalorder %s52, %s66
    %p68 = scmp.eq.s32.totalorder %s21, 0
    %p69 = por %p67, %p68
    %s71 = sadd.s32 %s70, 1
    %p74 = scmp.eq.s32.totalorder %s15, 1
    %p75 = scmp.ne.s32.totalorder %s70, %s72
    %p76 = scmp.eq.s32.totalorder %s15, 0
    %p77 = por %p75, %p76
    %p78 = scmp.ne.s32.totalorder %s70, %s72
    %p79 = scmp.eq.s32.totalorder %s20, 1
    %p80 = por %p78, %p79
    %p81 = scmp.ne.s32.totalorder %s72, %s73
    %p82 = scmp.eq.s32.totalorder %s20, 0
    %p83 = por %p81, %p82
    %p84 = scmp.ne.s32.totalorder %s72, %s73
    %p85 = scmp.eq.s32.totalorder %s21, 1
    %p86 = por %p84, %p85
    %p88 = scmp.ne.s32.totalorder %s73, %s87
    %p89 = scmp.eq.s32.totalorder %s21, 0
    %p90 = por %p88, %p89
    %s92 = sadd.s32 %s91, 1
    %p95 = scmp.eq.s32.totalorder %s15, 1
    %p96 = scmp.ne.s32.totalorder %s91, %s93
    %p97 = scmp.eq.s32.totalorder %s15, 0
    %p98 = por %p96, %p97
    %p99 = scmp.ne.s32.totalorder %s91, %s93
    %p100 = scmp.eq.s32.totalorder %s20, 1
    %p101 = por %p99, %p100
    %p102 = scmp.ne.s32.totalorder %s93, %s94
    %p103 = scmp.eq.s32.totalorder %s20, 0
    %p104 = por %p102, %p103
    %p105 = scmp.ne.s32.totalorder %s93, %s94
    %p106 = scmp.eq.s32.totalorder %s21, 1
    %p107 = por %p105, %p106
    %p109 = scmp.ne.s32.totalorder %s94, %s108
    %p110 = scmp.eq.s32.totalorder %s21, 0
    %p111 = por %p109, %p110
    %s113 = sadd.s32 %s112, 1
    %p116 = scmp.eq.s32.totalorder %s15, 1
    %p117 = scmp.ne.s32.totalorder %s112, %s114
    %p118 = scmp.eq.s32.totalorder %s15, 0
    %p119 = por %p117, %p118
    %p120 = scmp.ne.s32.totalorder %s112, %s114
    %p121 = scmp.eq.s32.totalorder %s20, 1
    %p122 = por %p120, %p121
    %p123 = scmp.ne.s32.totalorder %s114, %s115
    %p124 = scmp.eq.s32.totalorder %s20, 0
    %p125 = por %p123, %p124
    %p126 = scmp.ne.s32.totalorder %s114, %s115
    %p127 = scmp.eq.s32.totalorder %s21, 1
    %p128 = por %p126, %p127
    %p130 = scmp.ne.s32.totalorder %s115, %s129
    %p131 = scmp.eq.s32.totalorder %s21, 0
    %p132 = por %p130, %p131
    %s134 = sadd.s32 %s133, 1
    %p137 = scmp.eq.s32.totalorder %s15, 1
    %p138 = scmp.ne.s32.totalorder %s133, %s135
    %p139 = scmp.eq.s32.totalorder %s15, 0
    %p140 = por %p138, %p139
    %p141 = scmp.ne.s32.totalorder %s133, %s135
    %p142 = scmp.eq.s32.totalorder %s20, 1
    %p143 = por %p141, %p142
    %p144 = scmp.ne.s32.totalorder %s135, %s136
    %p145 = scmp.eq.s32.totalorder %s20, 0
    %p146 = por %p144, %p145
    %p147 = scmp.ne.s32.totalorder %s135, %s136
    %p148 = scmp.eq.s32.totalorder %s21, 1
    %p149 = por %p147, %p148
    %p151 = scmp.ne.s32.totalorder %s136, %s150
    %p152 = scmp.eq.s32.totalorder %s21, 0
    %p153 = por %p151, %p152
    %s155 = sadd.s32 %s154, 1
    %p158 = scmp.eq.s32.totalorder %s15, 1
    %p159 = scmp.ne.s32.totalorder %s154, %s156
    %p160 = scmp.eq.s32.totalorder %s15, 0
    %p161 = por %p159, %p160
    %p162 = scmp.ne.s32.totalorder %s154, %s156
    %p163 = scmp.eq.s32.totalorder %s20, 1
    %p164 = por %p162, %p163
    %p165 = scmp.ne.s32.totalorder %s156, %s157
    %p166 = scmp.eq.s32.totalorder %s20, 0
    %p167 = por %p165, %p166
    %p168 = scmp.ne.s32.totalorder %s156, %s157
    %p169 = scmp.eq.s32.totalorder %s21, 1
    %p170 = por %p168, %p169
    %p172 = scmp.ne.s32.totalorder %s157, %s171
    %p173 = scmp.eq.s32.totalorder %s21, 0
    %p174 = por %p172, %p173
    %s176 = sadd.s32 %s175, 1
    %p179 = scmp.eq.s32.totalorder %s15, 1
    %p180 = scmp.ne.s32.totalorder %s175, %s177
    %p181 = scmp.eq.s32.totalorder %s15, 0
    %p182 = por %p180, %p181
    %p183 = scmp.ne.s32.totalorder %s175, %s177
    %p184 = scmp.eq.s32.totalorder %s20, 1
    %p185 = por %p183, %p184
    %p186 = scmp.ne.s32.totalorder %s177, %s178
    %p187 = scmp.eq.s32.totalorder %s20, 0
    %p188 = por %p186, %p187
    %p189 = scmp.ne.s32.totalorder %s177, %s178
    %p190 = scmp.eq.s32.totalorder %s21, 1
    %p191 = por %p189, %p190
    %p193 = scmp.ne.s32.totalorder %s178, %s192
    %p194 = scmp.eq.s32.totalorder %s21, 0
    %p195 = por %p193, %p194
    %s197 = sadd.s32 %s196, 1
    %p200 = scmp.eq.s32.totalorder %s15, 1
    %p201 = scmp.ne.s32.totalorder %s196, %s198
    %p202 = scmp.eq.s32.totalorder %s15, 0
    %p203 = por %p201, %p202
    %p204 = scmp.ne.s32.totalorder %s196, %s198
    %p205 = scmp.eq.s32.totalorder %s20, 1
    %p206 = por %p204, %p205
    %p207 = scmp.ne.s32.totalorder %s198, %s199
    %p208 = scmp.eq.s32.totalorder %s20, 0
    %p209 = por %p207, %p208
    %p210 = scmp.ne.s32.totalorder %s198, %s199
    %p211 = scmp.eq.s32.totalorder %s21, 1
    %p212 = por %p210, %p211
    %p214 = scmp.ne.s32.totalorder %s199, %s213
    %p215 = scmp.eq.s32.totalorder %s21, 0
    %p216 = por %p214, %p215
    %s217 = ssub.s32 %s15, %s22
    %p218 = scmp.eq.s32.totalorder %s217, 0
    %s220 = sadd.s32 %s219, 1
    %s221 = scalar_select %p218, %s219, %s220
    %p224 = pneg %p218
    %p225 = scmp.eq.s32.totalorder %s15, 1
    %p226 = por %p224, %p225
    %p227 = scmp.ne.s32.totalorder %s219, %s222
    %p228 = scmp.eq.s32.totalorder %s15, 0
    %p229 = por %p227, %p228
    %p230 = scmp.ne.s32.totalorder %s219, %s222
    %p231 = scmp.eq.s32.totalorder %s20, 1
    %p232 = por %p230, %p231
    %p233 = scmp.ne.s32.totalorder %s222, %s223
    %p234 = scmp.eq.s32.totalorder %s20, 0
    %p235 = por %p233, %p234
    %p236 = scmp.ne.s32.totalorder %s222, %s223
    %p237 = scmp.eq.s32.totalorder %s21, 1
    %p238 = por %p236, %p237
    %p240 = scmp.ne.s32.totalorder %s223, %s239
    %p241 = scmp.eq.s32.totalorder %s21, 0
    %p242 = por %p240, %p241
    %p243 = scmp.le.s32.totalorder 1, %s15
    %p244 = scmp.lt.s32.totalorder %s15, 3
    %p245 = pnand %p243, %p244
    %p246 = pneg %p245
    // Predicated region
    $region9: #{xembed_forward.1} parent=5 // pred_check
      _
    $region10: #{xembed_forward.1} parent=5 // pred_check_branch
      %248 = sbr.rel (%p245) target = $region12
    $region11: #{xembed_forward.1} parent=5 // pred_region
      %s249 = ssub.s32 %s15, 1
      // Predicated region
      $region13: #{xembed_forward.1} parent=11 // pred_check
        %p250 = pneg %p62
      $region14: #{xembed_forward.1} parent=11 // pred_check_branch
        %252 = sbr.rel (%p250) target = $region16
      $region15: #{xembed_forward.1} parent=11 // pred_region
        _
      $region16: #{xembed_forward.1} parent=11 // pred_fallthru
        _
      // Predicated region
      $region17: #{xembed_forward.1} parent=11 // pred_check
        %p253 = pneg %p83
      $region18: #{xembed_forward.1} parent=11 // pred_check_branch
        %255 = sbr.rel (%p253) target = $region20
      $region19: #{xembed_forward.1} parent=11 // pred_region
        _
      $region20: #{xembed_forward.1} parent=11 // pred_fallthru
        _
      // Predicated region
      $region21: #{xembed_forward.1} parent=11 // pred_check
        %p256 = pneg %p104
      $region22: #{xembed_forward.1} parent=11 // pred_check_branch
        %258 = sbr.rel (%p256) target = $region24
      $region23: #{xembed_forward.1} parent=11 // pred_region
        _
      $region24: #{xembed_forward.1} parent=11 // pred_fallthru
        _
      // Predicated region
      $region25: #{xembed_forward.1} parent=11 // pred_check
        %p259 = pneg %p125
      $region26: #{xembed_forward.1} parent=11 // pred_check_branch
        %261 = sbr.rel (%p259) target = $region28
      $region27: #{xembed_forward.1} parent=11 // pred_region
        _
      $region28: #{xembed_forward.1} parent=11 // pred_fallthru
        _
      // Predicated region
      $region29: #{xembed_forward.1} parent=11 // pred_check
        %p262 = pneg %p146
      $region30: #{xembed_forward.1} parent=11 // pred_check_branch
        %264 = sbr.rel (%p262) target = $region32
      $region31: #{xembed_forward.1} parent=11 // pred_region
        _
      $region32: #{xembed_forward.1} parent=11 // pred_fallthru
        _
      // Predicated region
      $region33: #{xembed_forward.1} parent=11 // pred_check
        %p265 = pneg %p167
      $region34: #{xembed_forward.1} parent=11 // pred_check_branch
        %267 = sbr.rel (%p265) target = $region36
      $region35: #{xembed_forward.1} parent=11 // pred_region
        _
      $region36: #{xembed_forward.1} parent=11 // pred_fallthru
        _
      // Predicated region
      $region37: #{xembed_forward.1} parent=11 // pred_check
        %p268 = pneg %p188
      $region38: #{xembed_forward.1} parent=11 // pred_check_branch
        %270 = sbr.rel (%p268) target = $region40
      $region39: #{xembed_forward.1} parent=11 // pred_region
        _
      $region40: #{xembed_forward.1} parent=11 // pred_fallthru
        _
      // Predicated region
      $region41: #{xembed_forward.1} parent=11 // pred_check
        %p271 = pneg %p209
      $region42: #{xembed_forward.1} parent=11 // pred_check_branch
        %273 = sbr.rel (%p271) target = $region44
      $region43: #{xembed_forward.1} parent=11 // pred_region
        _
      $region44: #{xembed_forward.1} parent=11 // pred_fallthru
        _
    $region12: #{xembed_forward.1} parent=5 // pred_fallthru
      _
    %p274 = scmp.lt.s32.totalorder %s15, 2
    // Predicated region
    $region45: #{xembed_forward.1} parent=5 // pred_check
      %p275 = pneg %p274
    $region46: #{xembed_forward.1} parent=5 // pred_check_branch
      %277 = sbr.rel (%p275) target = $region48
    $region47: #{xembed_forward.1} parent=5 // pred_region
      // Predicated region
      $region49: #{xembed_forward.1} parent=47 // pred_check
        %p278 = pneg %p35
      $region50: #{xembed_forward.1} parent=47 // pred_check_branch
        %280 = sbr.rel (%p278) target = $region52
      $region51: #{xembed_forward.1} parent=47 // pred_region
        %p281 = scmp.lt.s32.totalorder %s15, 1
        %s282 = scalar_select %p281, %s15, 1
        %s283 = smul.addr %s282, 4
        %s284 = smul.addr %s283, 8
        %s285 = scalar_lea.vmem %s0, %s284
      $region52: #{xembed_forward.1} parent=47 // pred_fallthru
        _
    $region48: #{xembed_forward.1} parent=5 // pred_fallthru
      _
    %p286 = scmp.le.s32.totalorder 1, %s15
    %p287 = scmp.lt.s32.totalorder %s15, 3
    %p288 = pnand %p286, %p287
    %p289 = pneg %p288
    // Predicated region
    $region53: #{xembed_forward.1} parent=5 // pred_check
      _
    $region54: #{xembed_forward.1} parent=5 // pred_check_branch
      %291 = sbr.rel (%p288) target = $region56
    $region55: #{xembed_forward.1} parent=5 // pred_region
      %s292 = ssub.s32 %s15, 1
      %p293 = scmp.lt.s32.totalorder %s20, 1
      %s294 = scalar_select %p293, %s20, 1
      %s295 = smul.addr %s294, 4
      %s296 = smul.addr %s295, 8
      %s297 = scalar_lea.vmem %s0, %s296
      %p298 = pneg %p41
      %p299 = pneg %p38
      %p300 = pneg %p62
      %p301 = pneg %p59
      %p302 = pneg %p83
      %p303 = pneg %p80
      %p304 = pneg %p104
      %p305 = pneg %p101
      %p306 = pneg %p125
      %p307 = pneg %p122
      %p308 = pneg %p146
      %p309 = pneg %p143
      %p310 = pneg %p167
      %p311 = pneg %p164
      %p312 = pneg %p188
      %p313 = pneg %p185
      %p314 = pneg %p209
      %p315 = pneg %p206
      %p316 = pneg %p235
      %p317 = pneg %p232
      %p318 = scmp.lt.s32.totalorder %s20, 1
      %s319 = scalar_select %p318, %s20, 1
      %s320 = smul.addr %s319, 8
      %s321 = scalar_lea.vmem %s9, %s320
      %p322 = scmp.lt.s32.totalorder %s20, 1
      %s323 = scalar_select %p322, %s20, 1
      %s324 = smul.addr %s323, 4
      %s325 = smul.addr %s324, 8
      %s326 = scalar_lea.vmem %s0, %s325
      %p327 = scmp.lt.s32.totalorder %s20, 1
      %s328 = scalar_select %p327, %s20, 1
      %s329 = smul.addr %s328, 8
      %s330 = scalar_lea.vmem %s9, %s329
      %v331 = vld [vmem:[%s326] sm:$0xff]
      %v332 = vld [vmem:[%s326 + $0x8] sm:$0xff]
      %v333 = vld [vmem:[%s326 + $0x10] sm:$0xff]
      %v334 = vld [vmem:[%s326 + $0x18] sm:$0xff]
      %v335 = vld [vmem:[%s1] sm:$0xff]
      %v336 = vld [vmem:[%s1 + $0x8] sm:$0xff]
      %v337 = vld [vmem:[%s1 + $0x10] sm:$0xff]
      %v338 = vld [vmem:[%s1 + $0x18] sm:$0xff]
      %v339 = vld [vmem:[%s1 + $0x20] sm:$0xff]
      %v340 = vld [vmem:[%s1 + $0x28] sm:$0xff]
      %v341 = vld [vmem:[%s1 + $0x30] sm:$0xff]
      %v342 = vld [vmem:[%s1 + $0x38] sm:$0xff]
      %v343 = vld [vmem:[%s1 + $0x40] sm:$0xff]
      %v344 = vld [vmem:[%s1 + $0x48] sm:$0xff]
      %v345 = vld [vmem:[%s1 + $0x50] sm:$0xff]
      %v346 = vld [vmem:[%s1 + $0x58] sm:$0xff]
      %v347 = vld [vmem:[%s1 + $0x60] sm:$0xff]
      %v348 = vld [vmem:[%s1 + $0x68] sm:$0xff]
      %v349 = vld [vmem:[%s1 + $0x70] sm:$0xff]
      %v350 = vld [vmem:[%s1 + $0x78] sm:$0xff]
      %v351 = vld [vmem:[%s1 + $0x80] sm:$0xff]
      %v352 = vld [vmem:[%s1 + $0x88] sm:$0xff]
      %v353 = vld [vmem:[%s1 + $0x90] sm:$0xff]
      %v354 = vld [vmem:[%s1 + $0x98] sm:$0xff]
      %v355 = vld [vmem:[%s1 + $0xa0] sm:$0xff]
      %v356 = vld [vmem:[%s1 + $0xa8] sm:$0xff]
      %v357 = vld [vmem:[%s1 + $0xb0] sm:$0xff]
      %v358 = vld [vmem:[%s1 + $0xb8] sm:$0xff]
      %v359 = vld [vmem:[%s1 + $0xc0] sm:$0xff]
      %v360 = vld [vmem:[%s1 + $0xc8] sm:$0xff]
      %v361 = vld [vmem:[%s1 + $0xd0] sm:$0xff]
      %v362 = vld [vmem:[%s1 + $0xd8] sm:$0xff]
      %v363 = vld [vmem:[%s1 + $0xe0] sm:$0xff]
      %v364 = vld [vmem:[%s1 + $0xe8] sm:$0xff]
      %v365 = vld [vmem:[%s1 + $0xf0] sm:$0xff]
      %v366 = vld [vmem:[%s1 + $0xf8] sm:$0xff]
      %v367 = vld [vmem:[%s1 + $0x100] sm:$0xff]
      %v368 = vld [vmem:[%s1 + $0x108] sm:$0xff]
      %v369 = vld [vmem:[%s1 + $0x110] sm:$0xff]
      %v370 = vld [vmem:[%s1 + $0x118] sm:$0xff]
      %v371 = vld [vmem:[%s1 + $0x120] sm:$0xff]
      %v372 = vld [vmem:[%s1 + $0x128] sm:$0xff]
      %v373 = vld [vmem:[%s1 + $0x130] sm:$0xff]
      %v374 = vld [vmem:[%s1 + $0x138] sm:$0xff]
      %v375 = vld [vmem:[%s1 + $0x140] sm:$0xff]
      %v376 = vld [vmem:[%s1 + $0x148] sm:$0xff]
      %v377 = vld [vmem:[%s1 + $0x150] sm:$0xff]
      %v378 = vld [vmem:[%s1 + $0x158] sm:$0xff]
      %v379 = vld [vmem:[%s1 + $0x160] sm:$0xff]
      %v380 = vld [vmem:[%s1 + $0x168] sm:$0xff]
      %v381 = vld [vmem:[%s1 + $0x170] sm:$0xff]
      %v382 = vld [vmem:[%s1 + $0x178] sm:$0xff]
      %v383 = vld [vmem:[%s1 + $0x180] sm:$0x3f]
      %v384 = vld [vmem:[%s2] sm:$0x1]
      %v386 = vlaneseq
      %v387 = vshrl.u32 %v386, 7
      %v388 = vsub.s32 0, %v387
      %v389 = vrot.slane %v384, %v388
      %vm391 = vcmask 48128
      %v393 = vsel %vm391, %v334, 0
      %vm395 = vcmask 1045504
      %v397 = vsel %vm395, %v383, 0
      %399 = vmatprep.subr.mxu0 0.0
      %400 = vmatpush1.msra.mxu0 %v335
      %401 = vmatprep.subr.mxu0 0.0
      %402 = vmatpush1.msra.mxu0 %v336
      %403 = vmatprep.subr.mxu0 0.0
      %404 = vmatpush1.msra.mxu0 %v337
      %405 = vmatprep.subr.mxu0 0.0
      %406 = vmatpush1.msra.mxu0 %v338
      %407 = vmatprep.subr.mxu0 0.0
      %408 = vmatpush1.msra.mxu0 %v339
      %409 = vmatprep.subr.mxu0 0.0
      %410 = vmatpush1.msra.mxu0 %v340
      %411 = vmatprep.subr.mxu0 0.0
      %412 = vmatpush1.msra.mxu0 %v341
      %413 = vmatprep.subr.mxu0 0.0
      %414 = vmatpush1.msra.mxu0 %v342
      %415 = vmatprep.subr.mxu0 0.0
      %416 = vmatpush1.msra.mxu0 %v343
      %417 = vmatprep.subr.mxu0 0.0
      %418 = vmatpush1.msra.mxu0 %v344
      %419 = vmatprep.subr.mxu0 0.0
      %420 = vmatpush1.msra.mxu0 %v345
      %421 = vmatprep.subr.mxu0 0.0
      %422 = vmatpush1.msra.mxu0 %v346
      %423 = vmatprep.subr.mxu0 0.0
      %424 = vmatpush1.msra.mxu0 %v347
      %425 = vmatprep.subr.mxu0 0.0
      %426 = vmatpush1.msra.mxu0 %v348
      %427 = vmatprep.subr.mxu0 0.0
      %428 = vmatpush1.msra.mxu0 %v349
      %429 = vmatprep.subr.mxu0 0.0
      %430 = vmatpush1.msra.mxu0 %v350
      %431 = vmatprep.subr.mxu0 0.0
      %432 = vmatpush1.msra.mxu0 %v351
      %433 = vmatprep.subr.mxu0 0.0
      %434 = vmatpush1.msra.mxu0 %v352
      %435 = vmatprep.subr.mxu0 0.0
      %436 = vmatpush1.msra.mxu0 %v353
      %437 = vmatprep.subr.mxu0 0.0
      %438 = vmatpush1.msra.mxu0 %v354
      %439 = vmatprep.subr.mxu0 0.0
      %440 = vmatpush1.msra.mxu0 %v355
      %441 = vmatprep.subr.mxu0 0.0
      %442 = vmatpush1.msra.mxu0 %v356
      %443 = vmatprep.subr.mxu0 0.0
      %444 = vmatpush1.msra.mxu0 %v357
      %445 = vmatprep.subr.mxu0 0.0
      %446 = vmatpush1.msra.mxu0 %v358
      %447 = vmatprep.subr.mxu0 0.0
      %448 = vmatpush1.msra.mxu0 %v359
      %449 = vmatprep.subr.mxu0 0.0
      %450 = vmatpush1.msra.mxu0 %v360
      %451 = vmatprep.subr.mxu0 0.0
      %452 = vmatpush1.msra.mxu0 %v361
      %453 = vmatprep.subr.mxu0 0.0
      %454 = vmatpush1.msra.mxu0 %v362
      %455 = vmatprep.subr.mxu0 0.0
      %456 = vmatpush1.msra.mxu0 %v363
      %457 = vmatprep.subr.mxu0 0.0
      %458 = vmatpush1.msra.mxu0 %v364
      %459 = vmatprep.subr.mxu0 0.0
      %460 = vmatpush1.msra.mxu0 %v365
      %461 = vmatprep.subr.mxu0 0.0
      %462 = vmatpush1.msra.mxu0 %v366
      %463 = vmatprep.mubr.f32.mxu0 %v332
      %464 = vmatmul.mubr.f32.gmra.mrb[0].mxu0 %v331
      %v465 = vpop.f32.mrb[0].mxu0
      %v466 = vadd.f32 %v389, %v465
      %v467 = vpop.f32.mrb[0].mxu0
      %468 = vdwg.mxu0
      %469 = vmatprep.subr.mxu0 0.0
      %470 = vmatpush1.msra.mxu0 %v367
      %471 = vmatprep.subr.mxu0 0.0
      %472 = vmatpush1.msra.mxu0 %v368
      %473 = vmatprep.subr.mxu0 0.0
      %474 = vmatpush1.msra.mxu0 %v369
      %475 = vmatprep.subr.mxu0 0.0
      %476 = vmatpush1.msra.mxu0 %v370
      %477 = vmatprep.subr.mxu0 0.0
      %478 = vmatpush1.msra.mxu0 %v371
      %479 = vmatprep.subr.mxu0 0.0
      %480 = vmatpush1.msra.mxu0 %v372
      %481 = vmatprep.subr.mxu0 0.0
      %482 = vmatpush1.msra.mxu0 %v373
      %483 = vmatprep.subr.mxu0 0.0
      %484 = vmatpush1.msra.mxu0 %v374
      %485 = vmatprep.subr.mxu0 0.0
      %486 = vmatpush1.msra.mxu0 %v375
      %487 = vmatprep.subr.mxu0 0.0
      %488 = vmatpush1.msra.mxu0 %v376
      %489 = vmatprep.subr.mxu0 0.0
      %490 = vmatpush1.msra.mxu0 %v377
      %491 = vmatprep.subr.mxu0 0.0
      %492 = vmatpush1.msra.mxu0 %v378
      %493 = vmatprep.subr.mxu0 0.0
      %494 = vmatpush1.msra.mxu0 %v379
      %495 = vmatprep.subr.mxu0 0.0
      %496 = vmatpush1.msra.mxu0 %v380
      %497 = vmatprep.subr.mxu0 0.0
      %498 = vmatpush1.msra.mxu0 %v381
      %499 = vmatprep.subr.mxu0 0.0
      %500 = vmatpush1.msra.mxu0 %v382
      %501 = vmatprep.subr.mxu0 0.0
      %502 = vmatpush1.msra.mxu0 %v397
      %503 = vmatprep.subr.mxu0 0.0
      %504 = vmatpush1.msra.mxu0 0.0
      %505 = vmatprep.subr.mxu0 0.0
      %506 = vmatpush1.msra.mxu0 0.0
      %507 = vmatprep.subr.mxu0 0.0
      %508 = vmatpush1.msra.mxu0 0.0
      %509 = vmatprep.subr.mxu0 0.0
      %510 = vmatpush1.msra.mxu0 0.0
      %511 = vmatprep.subr.mxu0 0.0
      %512 = vmatpush1.msra.mxu0 0.0
      %513 = vmatprep.subr.mxu0 0.0
      %514 = vmatpush1.msra.mxu0 0.0
      %515 = vmatprep.subr.mxu0 0.0
      %516 = vmatpush1.msra.mxu0 0.0
      %517 = vmatprep.subr.mxu0 0.0
      %518 = vmatpush1.msra.mxu0 0.0
      %519 = vmatprep.subr.mxu0 0.0
      %520 = vmatpush1.msra.mxu0 0.0
      %521 = vmatprep.subr.mxu0 0.0
      %522 = vmatpush1.msra.mxu0 0.0
      %523 = vmatprep.subr.mxu0 0.0
      %524 = vmatpush1.msra.mxu0 0.0
      %525 = vmatprep.subr.mxu0 0.0
      %526 = vmatpush1.msra.mxu0 0.0
      %527 = vmatprep.subr.mxu0 0.0
      %528 = vmatpush1.msra.mxu0 0.0
      %529 = vmatprep.subr.mxu0 0.0
      %530 = vmatpush1.msra.mxu0 0.0
      %531 = vmatprep.subr.mxu0 0.0
      %532 = vmatpush1.msra.mxu0 0.0
      %533 = vmatprep.mubr.f32.mxu0 %v393
      %534 = vmatmul.mubr.f32.gmra.mrb[0].mxu0 %v333
      %v535 = vpop.f32.mrb[0].mxu0
      %v536 = vadd.f32 %v466, %v535
      %v537 = vpop.f32.mrb[0].mxu0
      %538 = vdwg.mxu0
      %v539 = vld [vmem:[%s3] sm:$0x1]
      %v540 = vld [vmem:[%s4] sm:$0x1]
      %541 = vadd.xlane.f32.xlu0 %v536
      %v542 = vpop.xlane.xlu0 %541
      %v543 = vmul.f32 %v536, %v536
      %544 = vadd.xlane.f32.xlu0 %v543
      %v545 = vpop.xlane.xlu0 %544
      %v546 = vmul.f32 %v542, 0.015625
      %v547 = vmul.f32 %v545, 0.015625
      %v548 = vmul.f32 %v546, %v546
      %v549 = vsub.f32 %v547, %v548
      %v550 = vmax.f32 %v549, 0.0
      %v551 = vadd.f32 %v550, 1e-05
      %v552 = vrsqrt.pop %v551
      %v553 = vsub.f32 %v536, %v546
      %v554 = vmul.f32 %v553, %v552
      %v556 = vlaneseq
      %v557 = vshrl.u32 %v556, 7
      %v558 = vsub.s32 0, %v557
      %v559 = vrot.slane %v539, %v558
      %v561 = vmul.f32 %v554, %v559
      %v563 = vlaneseq
      %v564 = vshrl.u32 %v563, 7
      %v565 = vsub.s32 0, %v564
      %v566 = vrot.slane %v540, %v565
      %v568 = vadd.f32 %v561, %v566
      %v569 = vmax.f32 %v568, 0.0
      %v570 = vld [vmem:[%s5] sm:$0xff]
      %v571 = vld [vmem:[%s5 + $0x8] sm:$0xff]
      %v572 = vld [vmem:[%s5 + $0x10] sm:$0xff]
      %v573 = vld [vmem:[%s5 + $0x18] sm:$0xff]
      %v574 = vld [vmem:[%s5 + $0x20] sm:$0xff]
      %v575 = vld [vmem:[%s5 + $0x28] sm:$0xff]
      %v576 = vld [vmem:[%s5 + $0x30] sm:$0xff]
      %v577 = vld [vmem:[%s5 + $0x38] sm:$0xff]
      %v578 = vld [vmem:[%s5 + $0x40] sm:$0xff]
      %v579 = vld [vmem:[%s5 + $0x48] sm:$0xff]
      %v580 = vld [vmem:[%s5 + $0x50] sm:$0xff]
      %v581 = vld [vmem:[%s5 + $0x58] sm:$0xff]
      %v582 = vld [vmem:[%s5 + $0x60] sm:$0xff]
      %v583 = vld [vmem:[%s5 + $0x68] sm:$0xff]
      %v584 = vld [vmem:[%s5 + $0x70] sm:$0xff]
      %v585 = vld [vmem:[%s5 + $0x78] sm:$0xff]
      %v586 = vld [vmem:[%s6] sm:$0x1]
      %v588 = vlaneseq
      %v589 = vshrl.u32 %v588, 7
      %v590 = vsub.s32 0, %v589
      %v591 = vrot.slane %v586, %v590
      %593 = vmatprep.subr.mxu0 0.0
      %594 = vmatpush1.msra.mxu0 %v570
      %595 = vmatprep.subr.mxu0 0.0
      %596 = vmatpush1.msra.mxu0 %v571
      %597 = vmatprep.subr.mxu0 0.0
      %598 = vmatpush1.msra.mxu0 %v572
      %599 = vmatprep.subr.mxu0 0.0
      %600 = vmatpush1.msra.mxu0 %v573
      %601 = vmatprep.subr.mxu0 0.0
      %602 = vmatpush1.msra.mxu0 %v574
      %603 = vmatprep.subr.mxu0 0.0
      %604 = vmatpush1.msra.mxu0 %v575
      %605 = vmatprep.subr.mxu0 0.0
      %606 = vmatpush1.msra.mxu0 %v576
      %607 = vmatprep.subr.mxu0 0.0
      %608 = vmatpush1.msra.mxu0 %v577
      %609 = vmatprep.subr.mxu0 0.0
      %610 = vmatpush1.msra.mxu0 %v578
      %611 = vmatprep.subr.mxu0 0.0
      %612 = vmatpush1.msra.mxu0 %v579
      %613 = vmatprep.subr.mxu0 0.0
      %614 = vmatpush1.msra.mxu0 %v580
      %615 = vmatprep.subr.mxu0 0.0
      %616 = vmatpush1.msra.mxu0 %v581
      %617 = vmatprep.subr.mxu0 0.0
      %618 = vmatpush1.msra.mxu0 %v582
      %619 = vmatprep.subr.mxu0 0.0
      %620 = vmatpush1.msra.mxu0 %v583
      %621 = vmatprep.subr.mxu0 0.0
      %622 = vmatpush1.msra.mxu0 %v584
      %623 = vmatprep.subr.mxu0 0.0
      %624 = vmatpush1.msra.mxu0 %v585
      %625 = vmatprep.subr.mxu0 0.0
      %626 = vmatpush1.msra.mxu0 0.0
      %627 = vmatprep.subr.mxu0 0.0
      %628 = vmatpush1.msra.mxu0 0.0
      %629 = vmatprep.subr.mxu0 0.0
      %630 = vmatpush1.msra.mxu0 0.0
      %631 = vmatprep.subr.mxu0 0.0
      %632 = vmatpush1.msra.mxu0 0.0
      %633 = vmatprep.subr.mxu0 0.0
      %634 = vmatpush1.msra.mxu0 0.0
      %635 = vmatprep.subr.mxu0 0.0
      %636 = vmatpush1.msra.mxu0 0.0
      %637 = vmatprep.subr.mxu0 0.0
      %638 = vmatpush1.msra.mxu0 0.0
      %639 = vmatprep.subr.mxu0 0.0
      %640 = vmatpush1.msra.mxu0 0.0
      %641 = vmatprep.subr.mxu0 0.0
      %642 = vmatpush1.msra.mxu0 0.0
      %643 = vmatprep.subr.mxu0 0.0
      %644 = vmatpush1.msra.mxu0 0.0
      %645 = vmatprep.subr.mxu0 0.0
      %646 = vmatpush1.msra.mxu0 0.0
      %647 = vmatprep.subr.mxu0 0.0
      %648 = vmatpush1.msra.mxu0 0.0
      %649 = vmatprep.subr.mxu0 0.0
      %650 = vmatpush1.msra.mxu0 0.0
      %651 = vmatprep.subr.mxu0 0.0
      %652 = vmatpush1.msra.mxu0 0.0
      %653 = vmatprep.subr.mxu0 0.0
      %654 = vmatpush1.msra.mxu0 0.0
      %655 = vmatprep.subr.mxu0 0.0
      %656 = vmatpush1.msra.mxu0 0.0
      %657 = vmatprep.mubr.f32.mxu0 0.0
      %658 = vmatmul.mubr.f32.gmra.mrb[0].mxu0 %v569
      %v659 = vpop.f32.mrb[0].mxu0
      %v660 = vadd.f32 %v591, %v659
      %v661 = vpop.f32.mrb[0].mxu0
      %662 = vdwg.mxu0
      %v663 = vld [vmem:[%s7] sm:$0x1]
      %v664 = vld [vmem:[%s8] sm:$0x1]
      %665 = vadd.xlane.f32.xlu0 %v660
      %v666 = vpop.xlane.xlu0 %665
      %v667 = vmul.f32 %v660, %v660
      %668 = vadd.xlane.f32.xlu0 %v667
      %v669 = vpop.xlane.xlu0 %668
      %v670 = vmul.f32 %v666, 0.03125
      %v671 = vmul.f32 %v669, 0.03125
      %v672 = vmul.f32 %v670, %v670
      %v673 = vsub.f32 %v671, %v672
      %v674 = vmax.f32 %v673, 0.0
      %v675 = vadd.f32 %v674, 1e-05
      %v676 = vrsqrt.pop %v675
      %v677 = vsub.f32 %v660, %v670
      %v678 = vmul.f32 %v677, %v676
      %v680 = vlaneseq
      %v681 = vshrl.u32 %v680, 7
      %v682 = vsub.s32 0, %v681
      %v683 = vrot.slane %v663, %v682
      %v685 = vmul.f32 %v678, %v683
      %v687 = vlaneseq
      %v688 = vshrl.u32 %v687, 7
      %v689 = vsub.s32 0, %v688
      %v690 = vrot.slane %v664, %v689
      %v692 = vadd.f32 %v685, %v690
      %v693 = vmax.f32 %v692, 0.0
      %694 = vst [vmem:[%s330] sm:$0xff] %v693
      %p695 = scmp.lt.s32.totalorder %s20, 1
      %s696 = scalar_select %p695, %s20, 1
      %s697 = smul.addr %s696, 8
      %s698 = scalar_lea.vmem %s9, %s697
      // Predicated region
      $region57: #{xembed_forward.1} parent=55 // pred_check
        %p699 = pneg %p232
      $region58: #{xembed_forward.1} parent=55 // pred_check_branch
        %701 = sbr.rel (%p699) target = $region60
      $region59: #{xembed_forward.1} parent=55 // pred_region
        _
      $region60: #{xembed_forward.1} parent=55 // pred_fallthru
        _
    $region56: #{xembed_forward.1} parent=5 // pred_fallthru
      _
    %p702 = scmp.le.s32.totalorder 2, %s15
    // Predicated region
    $region61: #{xembed_forward.1} parent=5 // pred_check
      %p703 = pneg %p702
    $region62: #{xembed_forward.1} parent=5 // pred_check_branch
      %705 = sbr.rel (%p703) target = $region64
    $region63: #{xembed_forward.1} parent=5 // pred_region
      %s706 = ssub.s32 %s15, 2
      // Predicated region
      $region65: #{xembed_forward.1} parent=63 // pred_check
        %p707 = pneg %p238
      $region66: #{xembed_forward.1} parent=63 // pred_check_branch
        %709 = sbr.rel (%p707) target = $region68
      $region67: #{xembed_forward.1} parent=63 // pred_region
        %p710 = scmp.lt.s32.totalorder %s21, 1
        %s711 = scalar_select %p710, %s21, 1
        %s712 = smul.addr %s711, 8
        %s713 = scalar_lea.vmem %s9, %s712
      $region68: #{xembed_forward.1} parent=63 // pred_fallthru
        _
    $region64: #{xembed_forward.1} parent=5 // pred_fallthru
      _
  $region6: #{xembed_forward.1} parent=0 // loop_footer
    %s19 = sadd.s32 1, %s15
  $region7: #{xembed_forward.1} parent=0 // loop_footer_branch
    %14 = sbr.rel target = $region3
  $region8: #{xembed_forward.1} parent=0 // loop_exit
    _

</llo_original>
